<compile_context>
chip_gen: v5e
topology: v5e:2x2
jax: 0.10.0
libtpu: 0.0.40
codegen_flags: <defaults>
</compile_context>

<pallas_src>
import jax
import jax.numpy as jnp
from jax.experimental import pallas as pl
from jax.experimental.pallas import tpu as pltpu


def value_head_kernel(x_ref, w_ref, b_ref, o_ref):
    # x_ref: (TM, H) activations (bf16 or f32)
    # w_ref: (H, 2) weight columns [w_hi | w_lo] in the activation dtype
    # b_ref: (1,)   f32 bias in SMEM
    # o_ref: (TM, 1) f32 output column
    parts = jnp.dot(x_ref[...], w_ref[...],
                    preferred_element_type=jnp.float32)            # MXU, (TM, 2)
    o_ref[...] = jnp.sum(parts, axis=-1, keepdims=True) + b_ref[0]  # hi + lo + bias


def _pick_tile_m(M, H, itemsize):
    """Rows per streamed x tile.

    Target ~10 MiB per x buffer (double-buffered by the pipeline) so per-step
    DMA dwarfs the ~0.35 us grid-step overhead, capped at 8192 rows.  When
    there are enough rows, also clamp so the grid has >= 4 steps (>= 2 per
    TensorCore on v7x megacore).
    """
    target_bytes = 10 * 1024 * 1024
    tm = target_bytes // max(1, H * itemsize)
    tm = max(128, min((tm // 128) * 128, 8192))
    if M >= 4 * 128:
        tm = min(tm, max(128, (M // (4 * 128)) * 128))  # >= ~4 grid steps
    return tm


def value_head_forward(hidden_states, weight, bias, *, tile_m=None):
    """Eval-mode ValueHead forward.

    hidden_states: (B, S, H) activations (bf16 or f32)
    weight:        (1, H) f32 nn.Linear(hidden, 1) weight
    bias:          (1,)   f32 nn.Linear bias
    Returns (B, S, 1) float32.
    """
    # TODO(synk): training-mode dropout (summary_dropout_prob) not applied;
    # this implements the eval-mode forward (dropout == identity).
    B, S, H = hidden_states.shape
    M = B * S
    x = hidden_states.reshape(M, H)            # keep activation dtype (bf16 ok)

    w_f32 = weight.reshape(1, H).astype(jnp.float32)
    if x.dtype == jnp.bfloat16:
        # Split the f32 weight into bf16 hi + bf16 lo residual so the MXU can
        # be fed raw bf16 activations while matching the f32 reference.
        w_hi = w_f32.astype(jnp.bfloat16)
        w_lo = (w_f32 - w_hi.astype(jnp.float32)).astype(jnp.bfloat16)
        w_packed = jnp.concatenate([w_hi, w_lo], axis=0).T          # (H, 2) bf16
    else:
        w_cast = w_f32.astype(x.dtype)
        w_packed = jnp.concatenate([w_cast, jnp.zeros_like(w_cast)], axis=0).T
    b = bias.reshape(1).astype(jnp.float32)

    if tile_m is None:
        tile_m = _pick_tile_m(M, H, x.dtype.itemsize)
    # Block-shape rule: tile is either the full M extent or a multiple of 128.
    tile_m = M if tile_m >= M else max(128, (tile_m // 128) * 128)
    grid = (pl.cdiv(M, tile_m),)

    # Explicit scoped-VMEM limit: double-buffered x/out tiles + weight + margin.
    # (v5e scoped default is 16 MiB; v7x physical VMEM is 64 MiB per TC.)
    need = (2 * tile_m * H * x.dtype.itemsize     # x double buffer
            + 2 * tile_m * 4                      # out double buffer
            + 2 * 1024 * 1024)                    # lane-padded weight + margin
    vmem_limit = int(min(max(need, 16 * 1024 * 1024), 48 * 1024 * 1024))

    cost = pl.CostEstimate(
        flops=2 * M * H,
        transcendentals=0,
        bytes_accessed=(M * H * x.dtype.itemsize + 4 * M
                        + w_packed.size * w_packed.dtype.itemsize + 4),
    )

    out = pl.pallas_call(
        value_head_kernel,
        out_shape=jax.ShapeDtypeStruct((M, 1), jnp.float32),
        grid_spec=pltpu.PrefetchScalarGridSpec(
            num_scalar_prefetch=0,
            grid=grid,
            in_specs=[
                pl.BlockSpec((tile_m, H), lambda i: (i, 0)),        # streamed x tiles
                pl.BlockSpec((H, 2), lambda i: (0, 0)),             # hi/lo weight resident
                pl.BlockSpec(memory_space=pltpu.MemorySpace.SMEM),  # bias scalar
            ],
            out_specs=pl.BlockSpec((tile_m, 1), lambda i: (i, 0)),  # natural (M,1) column
        ),
        compiler_params=pltpu.CompilerParams(
            dimension_semantics=("parallel",),   # rows independent -> v7x 2-TC sharding
            vmem_limit_bytes=vmem_limit,
        ),
        cost_estimate=cost,
    )(x, w_packed, b)
    return out.reshape(B, S, 1)


if __name__ == "__main__":
    key = jax.random.PRNGKey(0)
    k_x, k_w, k_b, k_x2 = jax.random.split(key, 4)

    B, S, H = 2, 8, 32  # batch, seq, hidden_size (toy shapes)

    # deterministic "parameters" for nn.Linear(hidden_size, 1)
    weight = jax.random.normal(k_w, (1, H), dtype=jnp.float32) * 0.02
    bias = jax.random.normal(k_b, (1,), dtype=jnp.float32) * 0.02

    def ref_fn(h):
        # Exact f32 reference via elementwise mul+sum (avoids MXU precision modes).
        return (jnp.sum(h.astype(jnp.float32) * weight.reshape(1, 1, H),
                        axis=-1, keepdims=True) + bias[0])

    # bf16 activations -> kernel feeds bf16 to the MXU with a hi/lo f32 weight split.
    hidden_states = jax.random.normal(k_x, (B, S, H), dtype=jnp.bfloat16)
    out = jax.block_until_ready(value_head_forward(hidden_states, weight, bias))
    ref = ref_fn(hidden_states)
    assert out.shape == (B, S, 1)
    assert jnp.allclose(out, ref, atol=1e-4, rtol=1e-4)

    # Multi-tile pipelined path with a ragged last tile (M = 400 -> 4 tiles of 128 rows).
    B2, S2 = 2, 200
    hidden2 = jax.random.normal(k_x2, (B2, S2, H), dtype=jnp.bfloat16)
    out2 = jax.block_until_ready(
        value_head_forward(hidden2, weight, bias, tile_m=128))
    ref2 = ref_fn(hidden2)
    assert out2.shape == (B2, S2, 1)
    assert jnp.allclose(out2, ref2, atol=1e-4, rtol=1e-4)

    # f32-activation path (weight passed straight through, zero lo column).
    hidden3 = hidden_states.astype(jnp.float32)
    out3 = jax.block_until_ready(value_head_forward(hidden3, weight, bias))
    assert jnp.allclose(out3, ref_fn(hidden3), atol=1e-4, rtol=1e-4)

    print("KERNEL_OK")
</pallas_src>

<mosaic_0001>
module attributes {stable_mosaic.version = 11 : i64} {
  func.func @value_head_kernel(%arg0: i32, %arg1: memref<16x32xbf16, #tpu.memory_space<vmem>>, %arg2: memref<32x2xbf16, #tpu.memory_space<vmem>>, %arg3: memref<1xf32, #tpu.memory_space<smem>>, %arg4: memref<16x1xf32, #tpu.memory_space<vmem>>) attributes {dimension_semantics = [#tpu.dimension_semantics<parallel>], iteration_bounds = array<i64: 1>, scalar_prefetch = 0 : i64, scratch_operands = 0 : i64, tpu.core_type = #tpu.core_type<tc>, window_params = [{transform_indices = @transform_0, window_bounds = array<i64: 16, 32>}, {pipeline_mode = #tpu.pipeline_mode<synchronous>, transform_indices = @transform_1, window_bounds = array<i64: 32, 2>}, {transform_indices = @transform_2, window_bounds = array<i64: 1>}, {transform_indices = @transform_3, window_bounds = array<i64: 16, 1>}]} {
    %c0 = arith.constant 0 : index
    %c0_0 = arith.constant 0 : index
    %0 = vector.load %arg1[%c0, %c0_0] : memref<16x32xbf16, #tpu.memory_space<vmem>>, vector<16x32xbf16>
    %c0_1 = arith.constant 0 : index
    %c0_2 = arith.constant 0 : index
    %1 = vector.load %arg2[%c0_1, %c0_2] : memref<32x2xbf16, #tpu.memory_space<vmem>>, vector<32x2xbf16>
    %cst = arith.constant dense<0.000000e+00> : vector<16x2xf32>
    %2 = tpu.matmul %0, %1, %cst {dimension_numbers = #tpu.dot_dimension_numbers<[1], [0], [0], [1], [0, 0, 1, 1], [], []>} : vector<16x32xbf16>, vector<32x2xbf16>, vector<16x2xf32> -> vector<16x2xf32>
    %cst_3 = arith.constant dense<0.000000e+00> : vector<16xf32>
    %3 = vector.multi_reduction <add>, %2, %cst_3 [1] : vector<16x2xf32> to vector<16xf32>
    %4 = vector.shape_cast %3 : vector<16xf32> to vector<16x1xf32>
    %c0_4 = arith.constant 0 : index
    %5 = memref.load %arg3[%c0_4] : memref<1xf32, #tpu.memory_space<smem>>
    %6 = vector.broadcast %5 : f32 to vector<16x1xf32>
    %7 = arith.addf %4, %6 : vector<16x1xf32>
    %c0_5 = arith.constant 0 : index
    %c0_6 = arith.constant 0 : index
    %8 = vector.load %arg4[%c0_5, %c0_6] : memref<16x1xf32, #tpu.memory_space<vmem>>, vector<16x1xf32>
    tpu.vector_store %arg4[%c0_5, %c0_6], %7 {strides = array<i32>} : memref<16x1xf32, #tpu.memory_space<vmem>>, vector<16x1xf32>,
    return
  }
  func.func @transform_0(%arg0: i32) -> (i32, i32) {
    %c0_i32 = arith.constant 0 : i32
    %c0_i32_0 = arith.constant 0 : i32
    return %arg0, %c0_i32 : i32, i32
  }
  func.func @transform_1(%arg0: i32) -> (i32, i32) {
    %c0_i32 = arith.constant 0 : i32
    %c0_i32_0 = arith.constant 0 : i32
    %c0_i32_1 = arith.constant 0 : i32
    return %c0_i32, %c0_i32_0 : i32, i32
  }
  func.func @transform_2(%arg0: i32) -> i32 {
    %c0_i32 = arith.constant 0 : i32
    %c0_i32_0 = arith.constant 0 : i32
    return %c0_i32 : i32
  }
  func.func @transform_3(%arg0: i32) -> (i32, i32) {
    %c0_i32 = arith.constant 0 : i32
    %c0_i32_0 = arith.constant 0 : i32
    return %arg0, %c0_i32 : i32, i32
  }
}

</mosaic_0001>

<llo_original>
// kernel: tpu_custom_call.1
$region0: #{tpu_custom_call.1}
  #allocation0 [shape = 'u32[]', space=smem, size = 0x4, offset = 0x4, fixed_abs, tag = 'smem constant byte address 0x4 - core index']
  #allocation1 [shape = 'u32[72,128]{1,0:T(1,128)}', space=vmem, size = 0x9000, scoped, tag = 'internal scratch']
  #allocation2 [shape = 'f32[1]{0:T(128)S(6)}', space=smem, size = 0x200, scoped, tag = 'scoped memory for tpu_custom_call.1']
  %s0 = inlined_call_operand.vmem [shape: bf16[16,32], index: 0, kind: input, shape index: {}]
  %s1 = inlined_call_operand.vmem [shape: bf16[32,2], index: 1, kind: input, shape index: {}]
  %s2 = inlined_call_operand.<no memory space> [shape: f32[1], index: 2, kind: input, shape index: {}]
  %s3 = inlined_call_operand.vmem [shape: f32[16,1], index: 3, kind: output, shape index: {}]
  %s4 = sld [smem:[#allocation0]]
  $region22: #{tpu_custom_call.1} parent=0
    _
  %s6 = ssub.s32 1, %s4
  %s7 = scalar_select 0, %s6, %s4
  %8 = sst [smem:[#allocation2]] %s2
  // Predicated region
  $region2: #{tpu_custom_call.1} parent=0 // pred_check
    _
  $region3: #{tpu_custom_call.1} parent=0 // pred_check_branch
    %10 = sbr.rel (0) target = $region5
  $region4: #{tpu_custom_call.1} parent=0 // pred_region
    _
  $region5: #{tpu_custom_call.1} parent=0 // pred_fallthru
    _
  // Predicated region
  $region6: #{tpu_custom_call.1} parent=0 // pred_check
    _
  $region7: #{tpu_custom_call.1} parent=0 // pred_check_branch
    %12 = sbr.rel (0) target = $region9
  $region8: #{tpu_custom_call.1} parent=0 // pred_region
    _
  $region9: #{tpu_custom_call.1} parent=0 // pred_fallthru
    _
  // Predicated region
  $region10: #{tpu_custom_call.1} parent=0 // pred_check
    _
  $region11: #{tpu_custom_call.1} parent=0 // pred_check_branch
    %14 = sbr.rel (0) target = $region13
  $region12: #{tpu_custom_call.1} parent=0 // pred_region
    _
  $region13: #{tpu_custom_call.1} parent=0 // pred_fallthru
    _
  %v16 = vld [vmem:[%s0] sm:$0xf]
  %v17 = vld [vmem:[%s0 + $0x4] sm:$0xf]
  %v18 = vld [vmem:[%s1] sm:$0xf]
  %v19 = vld [vmem:[%s1 + $0x4] sm:$0xf]
  %v20 = vld [vmem:[%s1 + $0x8] sm:$0xf]
  %v21 = vld [vmem:[%s1 + $0xc] sm:$0xf]
  %v24 = vunpack.c.l.b16 %v16
  %v25 = vunpack.c.l.b16 %v17
  %v26 = vpack.c.b16 %v25, %v24
  %v31 = vunpack.c.l.b16 %v18
  %v32 = vunpack.c.l.b16 %v19
  %v33 = vunpack.c.l.b16 %v20
  %v34 = vunpack.c.l.b16 %v21
  %v35 = vpack.c.b16 %v32, %v31
  %v36 = vpack.c.b16 %v34, %v33
  %vm39 = vcmask 261120
  %v41 = vsel %vm39, %v26, 0
  %43 = vmatpush.bf16.msra.mxu0 0
  %44 = vmatpush.bf16.msra.mxu0 0
  %45 = vmatpush.bf16.msra.mxu0 0
  %46 = vmatpush.bf16.msra.mxu0 0
  %47 = vmatpush.bf16.msra.mxu0 0
  %48 = vmatpush.bf16.msra.mxu0 0
  %49 = vmatpush.bf16.msra.mxu0 %v36
  %50 = vmatpush.bf16.msra.mxu0 %v35
  %51 = vmatmul.bf16.gmra.mxu0 %v41
  %v52 = vpop.f32.mrf.mxu0
  %v53 = vadd.f32 0.0, %v52
  %v54 = vpop.f32.mrf.mxu0
  %v55 = vadd.f32 0.0, %v54
  %56 = vdwg.mxu0
  %vm57 = vcmask 15360
  %v58 = vsel %vm57, %v53, 0.0
  %59 = vadd.xlane.f32.xlu0 %v58
  %v60 = vpop.xlane.xlu0 %59
  %v61 = vsel %vm57, %v55, 0.0
  %62 = vadd.xlane.f32.xlu0 %v61
  %v63 = vpop.xlane.xlu0 %62
  %s64 = sld [smem:[#allocation2]]
  %v65 = vstv %s64
  %v66 = vadd.f32 %v60, %v65
  %v67 = vadd.f32 %v63, %v65
  %vm68 = vcmask 7168
  %69 = vst.msk [vmem:[%s3] sm:$0xff] %vm68, %v66
  %70 = vst.msk [vmem:[%s3 + $0x8] sm:$0xff] %vm68, %v67
  // Predicated region
  $region14: #{tpu_custom_call.1} parent=0 // pred_check
    _
  $region15: #{tpu_custom_call.1} parent=0 // pred_check_branch
    %72 = sbr.rel (0) target = $region17
  $region16: #{tpu_custom_call.1} parent=0 // pred_region
    _
  $region17: #{tpu_custom_call.1} parent=0 // pred_fallthru
    _
  // Predicated region
  $region18: #{tpu_custom_call.1} parent=0 // pred_check
    _
  $region19: #{tpu_custom_call.1} parent=0 // pred_check_branch
    %74 = sbr.rel (0) target = $region21
  $region20: #{tpu_custom_call.1} parent=0 // pred_region
    _
  $region21: #{tpu_custom_call.1} parent=0 // pred_fallthru
    _

</llo_original>
